<compile_context>
chip_gen: v5e
topology: v5e:2x2
jax: 0.10.0
libtpu: 0.0.40
codegen_flags: <defaults>
</compile_context>

<pallas_src>
import jax
import jax.numpy as jnp
from jax.experimental import pallas as pl
from jax.experimental.pallas import tpu as pltpu


def _round_up(x, m):
    return (x + m - 1) // m * m


def _cdiv(a, b):
    return -(-a // b)


def _im2col(x, K, stride, padding, dilation):
    """x: (N, C, H, W) -> patches (N, Hout*Wout, C*K*K), Hout, Wout.

    Flatten order of the last axis is (C, kh, kw), matching
    torch weight.reshape(Cout, Cin*K*K).
    """
    N, C, H, W = x.shape
    if padding > 0:
        x = jnp.pad(x, ((0, 0), (0, 0), (padding, padding), (padding, padding)))
    Hp, Wp = x.shape[2], x.shape[3]
    Hout = (Hp - dilation * (K - 1) - 1) // stride + 1
    Wout = (Wp - dilation * (K - 1) - 1) // stride + 1
    cols = []
    for ki in range(K):
        for kj in range(K):
            patch = x[
                :,
                :,
                ki * dilation : ki * dilation + (Hout - 1) * stride + 1 : stride,
                kj * dilation : kj * dilation + (Wout - 1) * stride + 1 : stride,
            ]  # (N, C, Hout, Wout)
            cols.append(patch)
    patches = jnp.stack(cols, axis=2).reshape(N, C * K * K, Hout, Wout)
    patches = patches.transpose(0, 2, 3, 1).reshape(N, Hout * Wout, C * K * K)
    return patches, Hout, Wout


def _make_matmul_stats_kernel(tile_k, w_resident):
    """Pass 1: y = patches @ W (f32 acc scratch), per-P-tile channel stats."""

    def kernel(p_ref, w_ref, y_ref, sum_ref, sq_ref, acc_ref):
        # p_ref: (tile_p, tile_k); w_ref: (ck_pad, cout_pad) if resident else
        # (tile_k, cout_pad); y_ref: (tile_p, cout_pad) (bf16 by default);
        # sum_ref/sq_ref: (1, cout_pad) per-P-tile partials; acc_ref: f32 scratch.
        k = pl.program_id(1)
        nk = pl.num_programs(1)

        if w_resident:
            koff = pl.multiple_of(k * tile_k, tile_k)
            w = w_ref[pl.ds(koff, tile_k), :]
        else:
            w = w_ref[...]
        prod = jnp.dot(p_ref[...], w, preferred_element_type=jnp.float32)

        @pl.when(k == 0)
        def _():
            acc_ref[...] = prod

        @pl.when(k > 0)
        def _():
            acc_ref[...] += prod

        @pl.when(k == nk - 1)
        def _():
            acc = acc_ref[...]
            y_ref[...] = acc.astype(y_ref.dtype)
            # Stats from the f32 accumulator (not the bf16 store).
            sum_ref[...] = jnp.sum(acc, axis=0, keepdims=True)
            sq_ref[...] = jnp.sum(acc * acc, axis=0, keepdims=True)

    return kernel


def _bn_relu_transpose_kernel(y_ref, scale_ref, shift_ref, o_ref):
    # y_ref: (tile_p, cout_pad); scale/shift: (1, cout_pad) f32
    # o_ref: (cout_pad, tile_p) — transposed in-kernel (XLU slot) so the final
    # NCHW result needs no extra JAX-side transpose of the output tensor.
    z = jnp.maximum(
        y_ref[...].astype(jnp.float32) * scale_ref[...] + shift_ref[...], 0.0
    )
    o_ref[...] = z.T.astype(o_ref.dtype)


def conv2d_bn_relu(x, weight, bias, gamma, beta, *, stride=1, padding=0,
                   dilation=1, eps=1e-5, tile_p=512, tile_k=512,
                   matmul_dtype=jnp.bfloat16, y_dtype=None,
                   out_dtype=jnp.float32):
    """x: (N, Cin, H, W); weight: (Cout, Cin, K, K); bias/gamma/beta: (Cout,).

    `bias` is accepted for interface parity but intentionally unused: the
    training-mode BN mean subtraction cancels a per-channel bias exactly.
    """
    del bias  # cancelled exactly by BN mean subtraction
    N, Cin, H, W = x.shape
    Cout, _, K, _ = weight.shape
    if y_dtype is None:
        y_dtype = matmul_dtype

    patches, Hout, Wout = _im2col(x, K, stride, padding, dilation)  # (N, HW, CK)
    HW = Hout * Wout
    CK = Cin * K * K

    # ---- Tiling (lane-dense, minimal padding) ------------------------------
    cout_pad = _round_up(Cout, 128)

    # P tile: multiple of 128 (pass-2 transposed output lane dim); clamp so a
    # small feature map doesn't balloon the per-image padding.
    tile_p = max(128, (tile_p // 128) * 128)
    tile_p = min(tile_p, _round_up(HW, 128))
    hw_pad = _round_up(HW, tile_p)
    hw_tiles = hw_pad // tile_p
    np_tiles = N * hw_tiles

    # K tile: do NOT round ck up to a multiple of the requested tile_k; shrink
    # tile_k so the padding beyond CK stays under one 128-lane tile per split.
    ck128 = _round_up(CK, 128)
    tile_k = max(128, (tile_k // 128) * 128)
    if tile_k >= ck128:
        tile_k = ck128
        nk_tiles = 1
    else:
        nk_tiles = _cdiv(ck128, tile_k)
        tile_k = _round_up(_cdiv(ck128, nk_tiles), 128)
    ck_pad = nk_tiles * tile_k

    # Single pad of the (already materialized) patches, cast to bf16 first so
    # the padded copy is half-size.
    patches_p = jnp.pad(
        patches.astype(matmul_dtype),
        ((0, 0), (0, hw_pad - HW), (0, ck_pad - CK)),
    ).reshape(N * hw_pad, ck_pad)
    w_mat = jnp.pad(
        weight.reshape(Cout, CK).T.astype(matmul_dtype),
        ((0, ck_pad - CK), (0, cout_pad - Cout)),
    )

    dt_sz = jnp.dtype(matmul_dtype).itemsize
    y_sz = jnp.dtype(y_dtype).itemsize

    # Keep the whole weight resident in VMEM when it fits comfortably.
    w_resident = ck_pad * cout_pad * dt_sz <= 8 * 2**20
    if w_resident:
        w_spec = pl.BlockSpec((ck_pad, cout_pad), lambda i, k: (0, 0))
        w_bytes = ck_pad * cout_pad * dt_sz
    else:
        w_spec = pl.BlockSpec((tile_k, cout_pad), lambda i, k: (k, 0))
        w_bytes = 2 * tile_k * cout_pad * dt_sz

    est1 = (2 * tile_p * tile_k * dt_sz          # patches (double-buffered)
            + w_bytes                            # weight
            + 2 * tile_p * cout_pad * y_sz       # y output
            + tile_p * cout_pad * 4              # f32 accumulator scratch
            + 16 * cout_pad * 4)                 # stats blocks
    vmem1 = int(min(48 * 2**20, max(32 * 2**20, 2 * est1)))

    # ---- Pass 1: tiled matmul + per-P-tile channel sum / sum-of-squares ----
    y, s1p, s2p = pl.pallas_call(
        _make_matmul_stats_kernel(tile_k, w_resident),
        out_shape=(
            jax.ShapeDtypeStruct((N * hw_pad, cout_pad), y_dtype),
            jax.ShapeDtypeStruct((np_tiles, 1, cout_pad), jnp.float32),
            jax.ShapeDtypeStruct((np_tiles, 1, cout_pad), jnp.float32),
        ),
        grid_spec=pltpu.PrefetchScalarGridSpec(
            num_scalar_prefetch=0,
            grid=(np_tiles, nk_tiles),
            in_specs=[
                pl.BlockSpec((tile_p, tile_k), lambda i, k: (i, k)),
                w_spec,
            ],
            out_specs=[
                pl.BlockSpec((tile_p, cout_pad), lambda i, k: (i, 0)),
                pl.BlockSpec((None, 1, cout_pad), lambda i, k: (i, 0, 0)),
                pl.BlockSpec((None, 1, cout_pad), lambda i, k: (i, 0, 0)),
            ],
            scratch_shapes=[pltpu.VMEM((tile_p, cout_pad), jnp.float32)],
        ),
        compiler_params=pltpu.CompilerParams(
            dimension_semantics=("parallel", "arbitrary"),
            vmem_limit_bytes=vmem1),
    )(patches_p, w_mat)

    # ---- Tiny per-channel math (cout_pad elements) in JAX ------------------
    count = float(N * HW)               # padded rows are exact zeros -> ignored
    s1 = jnp.sum(s1p[:, 0, :], axis=0)
    s2 = jnp.sum(s2p[:, 0, :], axis=0)
    mean = s1 / count
    var = jnp.maximum(s2 / count - mean * mean, 0.0)  # guard f32 cancellation
    inv = jax.lax.rsqrt(var + eps)
    gamma_pad = jnp.zeros((cout_pad,), jnp.float32).at[:Cout].set(
        gamma.astype(jnp.float32))
    beta_pad = jnp.zeros((cout_pad,), jnp.float32).at[:Cout].set(
        beta.astype(jnp.float32))
    scale = (gamma_pad * inv).reshape(1, cout_pad)
    shift = (beta_pad - mean * gamma_pad * inv).reshape(1, cout_pad)

    # ---- Pass 2: streaming normalize + affine + ReLU + in-kernel transpose --
    est2 = (2 * tile_p * cout_pad * y_sz
            + 2 * cout_pad * tile_p * jnp.dtype(out_dtype).itemsize
            + 8 * cout_pad * 4)
    vmem2 = int(min(48 * 2**20, max(32 * 2**20, 2 * est2)))

    out_pad = pl.pallas_call(
        _bn_relu_transpose_kernel,
        out_shape=jax.ShapeDtypeStruct((N, cout_pad, hw_pad), out_dtype),
        grid_spec=pltpu.PrefetchScalarGridSpec(
            num_scalar_prefetch=0,
            grid=(N, hw_tiles),
            in_specs=[
                pl.BlockSpec((tile_p, cout_pad),
                             lambda n, j: (n * hw_tiles + j, 0)),
                pl.BlockSpec((1, cout_pad), lambda n, j: (0, 0)),
                pl.BlockSpec((1, cout_pad), lambda n, j: (0, 0)),
            ],
            out_specs=pl.BlockSpec((None, cout_pad, tile_p),
                                   lambda n, j: (n, 0, j)),
        ),
        compiler_params=pltpu.CompilerParams(
            dimension_semantics=("parallel", "parallel"),
            vmem_limit_bytes=vmem2),
    )(y, scale, shift)

    # Output is already channel-major per image; only a slice remains.
    return out_pad[:, :Cout, :HW].reshape(N, Cout, Hout, Wout)


def _reference(x, weight, bias, gamma, beta, *, stride=1, padding=0,
               dilation=1, eps=1e-5):
    """Pure-JAX reference matching the PyTorch forward (training-mode BN)."""
    y = jax.lax.conv_general_dilated(
        x, weight,
        window_strides=(stride, stride),
        padding=[(padding, padding), (padding, padding)],
        rhs_dilation=(dilation, dilation),
        dimension_numbers=("NCHW", "OIHW", "NCHW"),
    ) + bias.reshape(1, -1, 1, 1)
    mean = jnp.mean(y, axis=(0, 2, 3), keepdims=True)
    var = jnp.mean((y - mean) ** 2, axis=(0, 2, 3), keepdims=True)
    y = (y - mean) * jax.lax.rsqrt(var + eps)
    y = y * gamma.reshape(1, -1, 1, 1) + beta.reshape(1, -1, 1, 1)
    return jnp.maximum(y, 0.0)


if __name__ == "__main__":
    # Small shapes consistent with the module: N=2, in_ch=4, out_ch=8, 16x16.
    N, Cin, Cout, H, W, K = 2, 4, 8, 16, 16, 3
    key = jax.random.PRNGKey(0)
    kx, kw, kb = jax.random.split(key, 3)

    x = jax.random.normal(kx, (N, Cin, H, W), dtype=jnp.float32)
    fan_in = Cin * K * K
    bound = 1.0 / (fan_in ** 0.5)
    weight = jax.random.uniform(kw, (Cout, Cin, K, K), jnp.float32, -bound, bound)
    bias = jax.random.uniform(kb, (Cout,), jnp.float32, -bound, bound)
    gamma = jnp.ones((Cout,), jnp.float32)   # BatchNorm2d default init
    beta = jnp.zeros((Cout,), jnp.float32)

    ref = _reference(x, weight, bias, gamma, beta,
                     stride=1, padding=0, dilation=1)
    expect_shape = (N, Cout, H - K + 1, W - K + 1)

    # f32 path: tight correctness check. tile_p=128 exercises multiple P tiles,
    # padded rows, and the per-tile partial-stats reduction.
    out_f32 = conv2d_bn_relu(x, weight, bias, gamma, beta,
                             stride=1, padding=0, dilation=1,
                             tile_p=128, tile_k=128,
                             matmul_dtype=jnp.float32)
    jax.block_until_ready(out_f32)
    assert out_f32.shape == expect_shape, out_f32.shape
    assert jnp.allclose(out_f32, ref, atol=1e-4, rtol=1e-4), float(
        jnp.max(jnp.abs(out_f32 - ref)))

    # Default bf16 MXU path (the performance configuration); looser tolerance
    # since bf16 operands/intermediate shift BN statistics slightly.
    out_bf16 = conv2d_bn_relu(x, weight, bias, gamma, beta,
                              stride=1, padding=0, dilation=1,
                              tile_p=128, tile_k=128)
    jax.block_until_ready(out_bf16)
    assert out_bf16.shape == expect_shape, out_bf16.shape
    assert jnp.allclose(out_bf16, ref, atol=5e-2, rtol=5e-2), float(
        jnp.max(jnp.abs(out_bf16 - ref)))

    print("KERNEL_OK")
</pallas_src>

<mosaic_0001>
module attributes {stable_mosaic.version = 11 : i64} {
  func.func @kernel(%arg0: i32, %arg1: i32, %arg2: memref<128x128xf32, #tpu.memory_space<vmem>>, %arg3: memref<128x128xf32, #tpu.memory_space<vmem>>, %arg4: memref<128x128xf32, #tpu.memory_space<vmem>>, %arg5: memref<1x1x128xf32, #tpu.memory_space<vmem>>, %arg6: memref<1x1x128xf32, #tpu.memory_space<vmem>>, %arg7: memref<128x128xf32, #tpu.memory_space<vmem>>) attributes {dimension_semantics = [#tpu.dimension_semantics<parallel>, #tpu.dimension_semantics<arbitrary>], iteration_bounds = array<i64: 4, 1>, scalar_prefetch = 0 : i64, scratch_operands = 1 : i64, tpu.core_type = #tpu.core_type<tc>, window_params = [{transform_indices = @transform_0, window_bounds = array<i64: 128, 128>}, {pipeline_mode = #tpu.pipeline_mode<synchronous>, transform_indices = @transform_1, window_bounds = array<i64: 128, 128>}, {transform_indices = @transform_2, window_bounds = array<i64: 128, 128>}, {transform_indices = @transform_3, window_bounds = array<i64: 1, 1, 128>}, {transform_indices = @transform_4, window_bounds = array<i64: 1, 1, 128>}]} {
    %c128_i32 = arith.constant 128 : i32
    %0 = arith.muli %arg1, %c128_i32 : i32
    %1 = tpu.assume_multiple %0, 128 : i32
    %2 = arith.index_cast %1 : i32 to index
    %c0 = arith.constant 0 : index
    %3 = vector.load %arg3[%2, %c0] : memref<128x128xf32, #tpu.memory_space<vmem>>, vector<128x128xf32>
    %c0_0 = arith.constant 0 : index
    %c0_1 = arith.constant 0 : index
    %4 = vector.load %arg2[%c0_0, %c0_1] : memref<128x128xf32, #tpu.memory_space<vmem>>, vector<128x128xf32>
    %cst = arith.constant dense<0.000000e+00> : vector<128x128xf32>
    %5 = tpu.matmul %4, %3, %cst {dimension_numbers = #tpu.dot_dimension_numbers<[1], [0], [0], [1], [0, 0, 1, 1], [], []>} : vector<128x128xf32>, vector<128x128xf32>, vector<128x128xf32> -> vector<128x128xf32>
    %c0_i32 = arith.constant 0 : i32
    %6 = arith.cmpi eq, %arg1, %c0_i32 : i32
    %7 = arith.extui %6 : i1 to i32
    %c0_i32_2 = arith.constant 0 : i32
    %8 = arith.cmpi ne, %7, %c0_i32_2 : i32
    scf.if %8 {
      %c0_7 = arith.constant 0 : index
      %c0_8 = arith.constant 0 : index
      %15 = vector.load %arg7[%c0_7, %c0_8] : memref<128x128xf32, #tpu.memory_space<vmem>>, vector<128x128xf32>
      tpu.vector_store %arg7[%c0_7, %c0_8], %5 {strides = array<i32>} : memref<128x128xf32, #tpu.memory_space<vmem>>, vector<128x128xf32>,
    } else {
    }
    %c0_i32_3 = arith.constant 0 : i32
    %9 = arith.cmpi sgt, %arg1, %c0_i32_3 : i32
    %10 = arith.extui %9 : i1 to i32
    %c0_i32_4 = arith.constant 0 : i32
    %11 = arith.cmpi ne, %10, %c0_i32_4 : i32
    scf.if %11 {
      %c0_7 = arith.constant 0 : index
      %c0_8 = arith.constant 0 : index
      %15 = vector.load %arg7[%c0_7, %c0_8] : memref<128x128xf32, #tpu.memory_space<vmem>>, vector<128x128xf32>
      %16 = arith.addf %15, %5 : vector<128x128xf32>
      %c0_9 = arith.constant 0 : index
      %c0_10 = arith.constant 0 : index
      %17 = vector.load %arg7[%c0_9, %c0_10] : memref<128x128xf32, #tpu.memory_space<vmem>>, vector<128x128xf32>
      tpu.vector_store %arg7[%c0_9, %c0_10], %16 {strides = array<i32>} : memref<128x128xf32, #tpu.memory_space<vmem>>, vector<128x128xf32>,
    } else {
    }
    %c0_i32_5 = arith.constant 0 : i32
    %12 = arith.cmpi eq, %arg1, %c0_i32_5 : i32
    %13 = arith.extui %12 : i1 to i32
    %c0_i32_6 = arith.constant 0 : i32
    %14 = arith.cmpi ne, %13, %c0_i32_6 : i32
    scf.if %14 {
      %c0_7 = arith.constant 0 : index
      %c0_8 = arith.constant 0 : index
      %15 = vector.load %arg7[%c0_7, %c0_8] : memref<128x128xf32, #tpu.memory_space<vmem>>, vector<128x128xf32>
      %c0_9 = arith.constant 0 : index
      %c0_10 = arith.constant 0 : index
      %16 = vector.load %arg4[%c0_9, %c0_10] : memref<128x128xf32, #tpu.memory_space<vmem>>, vector<128x128xf32>
      tpu.vector_store %arg4[%c0_9, %c0_10], %15 {strides = array<i32>} : memref<128x128xf32, #tpu.memory_space<vmem>>, vector<128x128xf32>,
      %cst_11 = arith.constant dense<0.000000e+00> : vector<128xf32>
      %17 = vector.multi_reduction <add>, %15, %cst_11 [0] : vector<128x128xf32> to vector<128xf32>
      %18 = vector.shape_cast %17 : vector<128xf32> to vector<1x128xf32>
      %c0_12 = arith.constant 0 : index
      %c0_13 = arith.constant 0 : index
      %c0_14 = arith.constant 0 : index
      %19 = vector.load %arg5[%c0_12, %c0_13, %c0_14] : memref<1x1x128xf32, #tpu.memory_space<vmem>>, vector<1x1x128xf32>
      %20 = vector.shape_cast %19 : vector<1x1x128xf32> to vector<1x128xf32>
      %21 = vector.shape_cast %18 : vector<1x128xf32> to vector<1x1x128xf32>
      tpu.vector_store %arg5[%c0_12, %c0_13, %c0_14], %21 {strides = array<i32>} : memref<1x1x128xf32, #tpu.memory_space<vmem>>, vector<1x1x128xf32>,
      %22 = arith.mulf %15, %15 : vector<128x128xf32>
      %cst_15 = arith.constant dense<0.000000e+00> : vector<128xf32>
      %23 = vector.multi_reduction <add>, %22, %cst_15 [0] : vector<128x128xf32> to vector<128xf32>
      %24 = vector.shape_cast %23 : vector<128xf32> to vector<1x128xf32>
      %c0_16 = arith.constant 0 : index
      %c0_17 = arith.constant 0 : index
      %c0_18 = arith.constant 0 : index
      %25 = vector.load %arg6[%c0_16, %c0_17, %c0_18] : memref<1x1x128xf32, #tpu.memory_space<vmem>>, vector<1x1x128xf32>
      %26 = vector.shape_cast %25 : vector<1x1x128xf32> to vector<1x128xf32>
      %27 = vector.shape_cast %24 : vector<1x128xf32> to vector<1x1x128xf32>
      tpu.vector_store %arg6[%c0_16, %c0_17, %c0_18], %27 {strides = array<i32>} : memref<1x1x128xf32, #tpu.memory_space<vmem>>, vector<1x1x128xf32>,
    } else {
    }
    return
  }
  func.func @transform_0(%arg0: i32, %arg1: i32) -> (i32, i32) {
    %c0_i32 = arith.constant 0 : i32
    return %arg0, %arg1 : i32, i32
  }
  func.func @transform_1(%arg0: i32, %arg1: i32) -> (i32, i32) {
    %c0_i32 = arith.constant 0 : i32
    %c0_i32_0 = arith.constant 0 : i32
    %c0_i32_1 = arith.constant 0 : i32
    return %c0_i32, %c0_i32_0 : i32, i32
  }
  func.func @transform_2(%arg0: i32, %arg1: i32) -> (i32, i32) {
    %c0_i32 = arith.constant 0 : i32
    %c0_i32_0 = arith.constant 0 : i32
    return %arg0, %c0_i32 : i32, i32
  }
  func.func @transform_3(%arg0: i32, %arg1: i32) -> (i32, i32, i32) {
    %c0_i32 = arith.constant 0 : i32
    %c0_i32_0 = arith.constant 0 : i32
    %c0_i32_1 = arith.constant 0 : i32
    return %arg0, %c0_i32, %c0_i32_0 : i32, i32, i32
  }
  func.func @transform_4(%arg0: i32, %arg1: i32) -> (i32, i32, i32) {
    %c0_i32 = arith.constant 0 : i32
    %c0_i32_0 = arith.constant 0 : i32
    %c0_i32_1 = arith.constant 0 : i32
    return %arg0, %c0_i32, %c0_i32_0 : i32, i32, i32
  }
}

</mosaic_0001>

<llo_original>
// kernel: tpu_custom_call.1
$region0: #{tpu_custom_call.1}
  #allocation0 [shape = 'u32[]', space=smem, size = 0x4, offset = 0x4, fixed_abs, tag = 'smem constant byte address 0x4 - core index']
  #allocation1 [shape = 'u32[72,128]{1,0:T(1,128)}', space=vmem, size = 0x9000, scoped, tag = 'internal scratch']
  #allocation2 [shape = 'f32[128,128]{1,0:T(8,128)}', space=vmem, size = 0x10000, scoped, tag = 'scratch operand']
  %s0 = inlined_call_operand.hbm [shape: f32[512,128], index: 0, kind: input, shape index: {}]
  %s1 = inlined_call_operand.hbm [shape: f32[128,128], index: 1, kind: input, shape index: {}]
  %s2 = inlined_call_operand.hbm [shape: f32[512,128], index: 2, kind: output, shape index: {0}]
  %s3 = inlined_call_operand.hbm [shape: f32[4,1,128], index: 3, kind: output, shape index: {1}]
  %s4 = inlined_call_operand.hbm [shape: f32[4,1,128], index: 4, kind: output, shape index: {2}]
  %5 = xla_tuple %s2, %s3, %s4
  %s6 = sld [smem:[#allocation0]]
  $region77: #{tpu_custom_call.1} parent=0
    _
  %s8 = ssub.s32 1, %s6
  %s9 = scalar_select 0, %s8, %s6
  $region1: #{tpu_custom_call.1} parent=0
    #allocation3 [shape = 'u8[131072]{0}', space=vmem, size = 0x20000, scoped, tag = 'input window, operand 0']
    #allocation4 [shape = 's32[2]{0}', space=sflag, size = 0x8, scoped, tag = 'scoped memory for tpu_custom_call.1']
    #allocation5 [shape = 's32[2]{0}', space=sflag, size = 0x8, scoped, tag = 'scoped memory for tpu_custom_call.1']
    #allocation6 [shape = 'u8[65536]{0}', space=vmem, size = 0x10000, scoped, tag = 'input window, operand 1, single buffered']
    #allocation7 [shape = 's32[1]{0}', space=sflag, size = 0x4, scoped, tag = 'scoped memory for tpu_custom_call.1']
    #allocation8 [shape = 'u8[131072]{0}', space=vmem, size = 0x20000, scoped, tag = 'output window, operand 0']
    #allocation9 [shape = 'u8[1024]{0}', space=vmem, size = 0x400, scoped, tag = 'output window, operand 1']
    #allocation10 [shape = 's32[2]{0}', space=sflag, size = 0x8, scoped, tag = 'scoped memory for tpu_custom_call.1']
    #allocation11 [shape = 'u8[1024]{0}', space=vmem, size = 0x400, scoped, tag = 'output window, operand 2']
    %10 = vsyncpa [#allocation4], 0
    %s11 = scalar_lea.sflag [#allocation4], 1
    %12 = vsyncpa %s11, 0
    %13 = vsyncpa [#allocation7], 0
    %14 = vsyncpa [#allocation5], 0
    %s15 = scalar_lea.sflag [#allocation5], 1
    %16 = vsyncpa %s15, 0
    %17 = vsyncpa [#allocation10], 0
    %s18 = scalar_lea.sflag [#allocation10], 1
    %19 = vsyncpa %s18, 0
    loop: start=0, step=1, limit=6
    $region2: #{tpu_custom_call.1} parent=1 // loop_pre_header
      _
    $region3: #{tpu_custom_call.1} parent=1 // loop_header
      %s21 = sphi 0, %s25
      %p22 = scmp.ge.s32.totalorder %s21, 6
      %s28 = sphi 0, %s40
      %s29 = sphi 0, %s36
      %s30 = sphi 0, %s28
      %s31 = sphi 0, %s29
      %s32 = sphi 0, %s30
      %s33 = sphi 0, %s31
      %s45 = sphi 0, %s47
      %s48 = sphi 0, %s45
      %s49 = sphi 0, %s48
      %s65 = sphi 0, %s49
      %s69 = sphi 0, %s69
      %s71 = sphi 0, %s69
      %s72 = sphi 0, %s71
      %s86 = sphi 0, %s72
      %s92 = sphi 0, %s94
      %s95 = sphi 0, %s92
      %s96 = sphi 0, %s95
      %s112 = sphi 0, %s96
      %s118 = sphi 0, %s120
      %s121 = sphi 0, %s118
      %s122 = sphi 0, %s121
      %s138 = sphi 0, %s122
      %s144 = sphi 0, %s146
      %s147 = sphi 0, %s144
      %s148 = sphi 0, %s147
      %s164 = sphi 0, %s148
    $region4: #{tpu_custom_call.1} parent=1 // loop_header_branch
      %24 = sbr.rel (%p22) target = $region8
    $region5: #{tpu_custom_call.1} parent=1 // loop_body
      %s26 = ssub.s32 %s21, 1
      %s27 = ssub.s32 %s21, 2
      %s34 = sadd.s32 1, %s29
      %p35 = scmp.ge.s32.totalorder %s34, 1
      %s36 = scalar_select %p35, 0, %s34
      %s37 = sadd.s32 1, %s28
      %s38 = scalar_select %p35, %s37, %s28
      %p39 = scmp.ge.s32.totalorder %s38, 4
      %s40 = scalar_select %p39, 0, %s38
      %s41 = ssub.s32 %s28, %s40
      %s42 = ssub.s32 %s29, %s36
      %s43 = sor.u32 %s41, %s42
      %p44 = scmp.eq.s32.totalorder %s43, 0
      %s46 = sadd.s32 %s45, 1
      %s47 = scalar_select %p44, %s45, %s46
      %p50 = pneg %p44
      %p51 = scmp.eq.s32.totalorder %s21, 3
      %p52 = por %p50, %p51
      %p53 = scmp.ne.s32.totalorder %s45, %s48
      %p54 = scmp.eq.s32.totalorder %s21, 0
      %p55 = por %p53, %p54
      %p56 = scmp.ne.s32.totalorder %s45, %s48
      %p57 = scmp.eq.s32.totalorder %s26, 3
      %p58 = por %p56, %p57
      %p59 = scmp.ne.s32.totalorder %s48, %s49
      %p60 = scmp.eq.s32.totalorder %s26, 0
      %p61 = por %p59, %p60
      %p62 = scmp.ne.s32.totalorder %s48, %s49
      %p63 = scmp.eq.s32.totalorder %s27, 3
      %p64 = por %p62, %p63
      %p66 = scmp.ne.s32.totalorder %s49, %s65
      %p67 = scmp.eq.s32.totalorder %s27, 0
      %p68 = por %p66, %p67
      %s70 = sadd.s32 %s69, 1
      %p73 = scmp.eq.s32.totalorder %s21, 3
      %p74 = scmp.ne.s32.totalorder %s69, %s71
      %p75 = scmp.eq.s32.totalorder %s21, 0
      %p76 = por %p74, %p75
      %p77 = scmp.ne.s32.totalorder %s69, %s71
      %p78 = scmp.eq.s32.totalorder %s26, 3
      %p79 = por %p77, %p78
      %p80 = scmp.ne.s32.totalorder %s71, %s72
      %p81 = scmp.eq.s32.totalorder %s26, 0
      %p82 = por %p80, %p81
      %p83 = scmp.ne.s32.totalorder %s71, %s72
      %p84 = scmp.eq.s32.totalorder %s27, 3
      %p85 = por %p83, %p84
      %p87 = scmp.ne.s32.totalorder %s72, %s86
      %p88 = scmp.eq.s32.totalorder %s27, 0
      %p89 = por %p87, %p88
      %s90 = ssub.s32 %s28, %s40
      %p91 = scmp.eq.s32.totalorder %s90, 0
      %s93 = sadd.s32 %s92, 1
      %s94 = scalar_select %p91, %s92, %s93
      %p97 = pneg %p91
      %p98 = scmp.eq.s32.totalorder %s21, 3
      %p99 = por %p97, %p98
      %p100 = scmp.ne.s32.totalorder %s92, %s95
      %p101 = scmp.eq.s32.totalorder %s21, 0
      %p102 = por %p100, %p101
      %p103 = scmp.ne.s32.totalorder %s92, %s95
      %p104 = scmp.eq.s32.totalorder %s26, 3
      %p105 = por %p103, %p104
      %p106 = scmp.ne.s32.totalorder %s95, %s96
      %p107 = scmp.eq.s32.totalorder %s26, 0
      %p108 = por %p106, %p107
      %p109 = scmp.ne.s32.totalorder %s95, %s96
      %p110 = scmp.eq.s32.totalorder %s27, 3
      %p111 = por %p109, %p110
      %p113 = scmp.ne.s32.totalorder %s96, %s112
      %p114 = scmp.eq.s32.totalorder %s27, 0
      %p115 = por %p113, %p114
      %s116 = ssub.s32 %s28, %s40
      %p117 = scmp.eq.s32.totalorder %s116, 0
      %s119 = sadd.s32 %s118, 1
      %s120 = scalar_select %p117, %s118, %s119
      %p123 = pneg %p117
      %p124 = scmp.eq.s32.totalorder %s21, 3
      %p125 = por %p123, %p124
      %p126 = scmp.ne.s32.totalorder %s118, %s121
      %p127 = scmp.eq.s32.totalorder %s21, 0
      %p128 = por %p126, %p127
      %p129 = scmp.ne.s32.totalorder %s118, %s121
      %p130 = scmp.eq.s32.totalorder %s26, 3
      %p131 = por %p129, %p130
      %p132 = scmp.ne.s32.totalorder %s121, %s122
      %p133 = scmp.eq.s32.totalorder %s26, 0
      %p134 = por %p132, %p133
      %p135 = scmp.ne.s32.totalorder %s121, %s122
      %p136 = scmp.eq.s32.totalorder %s27, 3
      %p137 = por %p135, %p136
      %p139 = scmp.ne.s32.totalorder %s122, %s138
      %p140 = scmp.eq.s32.totalorder %s27, 0
      %p141 = por %p139, %p140
      %s142 = ssub.s32 %s28, %s40
      %p143 = scmp.eq.s32.totalorder %s142, 0
      %s145 = sadd.s32 %s144, 1
      %s146 = scalar_select %p143, %s144, %s145
      %p149 = pneg %p143
      %p150 = scmp.eq.s32.totalorder %s21, 3
      %p151 = por %p149, %p150
      %p152 = scmp.ne.s32.totalorder %s144, %s147
      %p153 = scmp.eq.s32.totalorder %s21, 0
      %p154 = por %p152, %p153
      %p155 = scmp.ne.s32.totalorder %s144, %s147
      %p156 = scmp.eq.s32.totalorder %s26, 3
      %p157 = por %p155, %p156
      %p158 = scmp.ne.s32.totalorder %s147, %s148
      %p159 = scmp.eq.s32.totalorder %s26, 0
      %p160 = por %p158, %p159
      %p161 = scmp.ne.s32.totalorder %s147, %s148
      %p162 = scmp.eq.s32.totalorder %s27, 3
      %p163 = por %p161, %p162
      %p165 = scmp.ne.s32.totalorder %s148, %s164
      %p166 = scmp.eq.s32.totalorder %s27, 0
      %p167 = por %p165, %p166
      %p168 = scmp.le.s32.totalorder 1, %s21
      %p169 = scmp.lt.s32.totalorder %s21, 5
      %p170 = pnand %p168, %p169
      %p171 = pneg %p170
      // Predicated region
      $region9: #{tpu_custom_call.1} parent=5 // pred_check
        _
      $region10: #{tpu_custom_call.1} parent=5 // pred_check_branch
        %173 = sbr.rel (%p170) target = $region12
      $region11: #{tpu_custom_call.1} parent=5 // pred_region
        %s174 = ssub.s32 %s21, 1
        // Predicated region
        $region13: #{tpu_custom_call.1} parent=11 // pred_check
          %p175 = pneg %p82
        $region14: #{tpu_custom_call.1} parent=11 // pred_check_branch
          %177 = sbr.rel (%p175) target = $region16
        $region15: #{tpu_custom_call.1} parent=11 // pred_region
          %179 = vsyncadd [#allocation7], 0
          %s180 = sshll.u32 %s1, 4
          %s181 = int_to_ptr.hbm [resolvable:$true] %s180
          %s182 = sshll.u32 [#allocation6], 4
          %s183 = int_to_ptr.vmem [resolvable:$true] %s182
          %188 = dma.hbm_to_vmem [thread:$0]  %s181, 2048, %s183, [#allocation7], 128, 128, 8
        $region16: #{tpu_custom_call.1} parent=11 // pred_fallthru
          _
      $region12: #{tpu_custom_call.1} parent=5 // pred_fallthru
        _
      %p189 = scmp.lt.s32.totalorder %s21, 4
      // Predicated region
      $region17: #{tpu_custom_call.1} parent=5 // pred_check
        %p190 = pneg %p189
      $region18: #{tpu_custom_call.1} parent=5 // pred_check_branch
        %192 = sbr.rel (%p190) target = $region20
      $region19: #{tpu_custom_call.1} parent=5 // pred_region
        // Predicated region
        $region21: #{tpu_custom_call.1} parent=19 // pred_check
          %p193 = pneg %p55
        $region22: #{tpu_custom_call.1} parent=19 // pred_check_branch
          %195 = sbr.rel (%p193) target = $region24
        $region23: #{tpu_custom_call.1} parent=19 // pred_region
          %s196 = sand.u32 %s45, 1
          %s197 = scalar_lea.sflag [#allocation4], %s196
          %s198 = sand.u32 %s45, 1
          %s199 = smul.addr %s198, 128
          %s200 = scalar_lea.vmem [#allocation3], %s199
          %s201 = smul.u32 16, %s28
          %203 = vsyncadd %s197, 0
          %s204 = sadd.s32 %s29, %s201
          %s205 = smul.addr %s204, 8
          %s206 = scalar_lea.hbm %s0, %s205
          %s207 = sshll.u32 %s206, 4
          %s208 = int_to_ptr.hbm [resolvable:$true] %s207
          %s209 = sshll.u32 %s200, 4
          %s210 = int_to_ptr.vmem [resolvable:$true] %s209
          %215 = dma.hbm_to_vmem [thread:$0]  %s208, 2048, %s210, %s197, 128, 128, 8
        $region24: #{tpu_custom_call.1} parent=19 // pred_fallthru
          _
      $region20: #{tpu_custom_call.1} parent=5 // pred_fallthru
        _
      %p216 = scmp.le.s32.totalorder 1, %s21
      %p217 = scmp.lt.s32.totalorder %s21, 5
      %p218 = pnand %p216, %p217
      %p219 = pneg %p218
      // Predicated region
      $region25: #{tpu_custom_call.1} parent=5 // pred_check
        _
      $region26: #{tpu_custom_call.1} parent=5 // pred_check_branch
        %221 = sbr.rel (%p218) target = $region28
      $region27: #{tpu_custom_call.1} parent=5 // pred_region
        %s222 = ssub.s32 %s21, 1
        %s223 = sand.u32 %s48, 1
        %s224 = scalar_lea.sflag [#allocation4], %s223
        %s225 = sand.u32 %s48, 1
        %s226 = smul.addr %s225, 128
        %s227 = scalar_lea.vmem [#allocation3], %s226
        // Predicated region
        $region29: #{tpu_custom_call.1} parent=27 // pred_check
          %p228 = pneg %p61
        $region30: #{tpu_custom_call.1} parent=27 // pred_check_branch
          %230 = sbr.rel (%p228) target = $region32
        $region31: #{tpu_custom_call.1} parent=27 // pred_region
          %232 = dma.done %s224, 2048
        $region32: #{tpu_custom_call.1} parent=27 // pred_fallthru
          _
        // Predicated region
        $region33: #{tpu_custom_call.1} parent=27 // pred_check
          %p233 = pneg %p82
        $region34: #{tpu_custom_call.1} parent=27 // pred_check_branch
          %235 = sbr.rel (%p233) target = $region36
        $region35: #{tpu_custom_call.1} parent=27 // pred_region
          %237 = dma.done [#allocation7], 2048
        $region36: #{tpu_custom_call.1} parent=27 // pred_fallthru
          _
        %s238 = sand.u32 %s48, 1
        %s239 = scalar_lea.sflag [#allocation4], %s238
        %s240 = sand.u32 %s48, 1
        %s241 = smul.addr %s240, 128
        %s242 = scalar_lea.vmem [#allocation3], %s241
        %p243 = pneg %p61
        %p244 = pneg %p58
        %p245 = pneg %p82
        %p246 = pneg %p79
        %p247 = pneg %p108
        %p248 = pneg %p105
        %s249 = sand.u32 %s95, 1
        %s250 = scalar_lea.sflag [#allocation5], %s249
        %s251 = sand.u32 %s95, 1
        %s252 = smul.addr %s251, 128
        %s253 = scalar_lea.vmem [#allocation8], %s252
        %p254 = pneg %p134
        %p255 = pneg %p131
        %s256 = sand.u32 %s26, 1
        %s257 = scalar_lea.sflag [#allocation10], %s256
        %s258 = sand.u32 %s121, 1
        %s259 = scalar_lea.vmem [#allocation9], %s258
        %p260 = pneg %p160
        %p261 = pneg %p157
        %s262 = sand.u32 %s26, 1
        %s263 = scalar_lea.sflag [#allocation10], %s262
        %s264 = sand.u32 %s147, 1
        %s265 = scalar_lea.vmem [#allocation11], %s264
        %s266 = smul.u32 16, %s30
        %s267 = smul.u32 16, %s30
        %s268 = smul.u32 %s31, 128
        %s269 = scalar_lea.vmem [#allocation6], %s268
        %v270 = vld [vmem:[%s269] sm:$0xff]
        %v271 = vld [vmem:[%s269 + $0x8] sm:$0xff]
        %v272 = vld [vmem:[%s269 + $0x10] sm:$0xff]
        %v273 = vld [vmem:[%s269 + $0x18] sm:$0xff]
        %v274 = vld [vmem:[%s269 + $0x20] sm:$0xff]
        %v275 = vld [vmem:[%s269 + $0x28] sm:$0xff]
        %v276 = vld [vmem:[%s269 + $0x30] sm:$0xff]
        %v277 = vld [vmem:[%s269 + $0x38] sm:$0xff]
        %v278 = vld [vmem:[%s269 + $0x40] sm:$0xff]
        %v279 = vld [vmem:[%s269 + $0x48] sm:$0xff]
        %v280 = vld [vmem:[%s269 + $0x50] sm:$0xff]
        %v281 = vld [vmem:[%s269 + $0x58] sm:$0xff]
        %v282 = vld [vmem:[%s269 + $0x60] sm:$0xff]
        %v283 = vld [vmem:[%s269 + $0x68] sm:$0xff]
        %v284 = vld [vmem:[%s269 + $0x70] sm:$0xff]
        %v285 = vld [vmem:[%s269 + $0x78] sm:$0xff]
        %v286 = vld [vmem:[%s227] sm:$0xff]
        %v287 = vld [vmem:[%s227 + $0x8] sm:$0xff]
        %v288 = vld [vmem:[%s227 + $0x10] sm:$0xff]
        %v289 = vld [vmem:[%s227 + $0x18] sm:$0xff]
        %v290 = vld [vmem:[%s227 + $0x20] sm:$0xff]
        %v291 = vld [vmem:[%s227 + $0x28] sm:$0xff]
        %v292 = vld [vmem:[%s227 + $0x30] sm:$0xff]
        %v293 = vld [vmem:[%s227 + $0x38] sm:$0xff]
        %v294 = vld [vmem:[%s227 + $0x40] sm:$0xff]
        %v295 = vld [vmem:[%s227 + $0x48] sm:$0xff]
        %v296 = vld [vmem:[%s227 + $0x50] sm:$0xff]
        %v297 = vld [vmem:[%s227 + $0x58] sm:$0xff]
        %v298 = vld [vmem:[%s227 + $0x60] sm:$0xff]
        %v299 = vld [vmem:[%s227 + $0x68] sm:$0xff]
        %v300 = vld [vmem:[%s227 + $0x70] sm:$0xff]
        %v301 = vld [vmem:[%s227 + $0x78] sm:$0xff]
        %302 = vmatpush.msra.mxu0 %v285
        %303 = vmatpush.msra.mxu0 %v284
        %304 = vmatpush.msra.mxu0 %v283
        %305 = vmatpush.msra.mxu0 %v282
        %306 = vmatpush.msra.mxu0 %v281
        %307 = vmatpush.msra.mxu0 %v280
        %308 = vmatpush.msra.mxu0 %v279
        %309 = vmatpush.msra.mxu0 %v278
        %310 = vmatpush.msra.mxu0 %v277
        %311 = vmatpush.msra.mxu0 %v276
        %312 = vmatpush.msra.mxu0 %v275
        %313 = vmatpush.msra.mxu0 %v274
        %314 = vmatpush.msra.mxu0 %v273
        %315 = vmatpush.msra.mxu0 %v272
        %316 = vmatpush.msra.mxu0 %v271
        %317 = vmatpush.msra.mxu0 %v270
        %318 = vmatmul.f32.gmra.mxu0 %v286
        %v319 = vpop.f32.mrf.mxu0
        %v320 = vadd.f32 0.0, %v319
        %321 = vmatmul.f32.gmra.mxu0 %v287
        %v322 = vpop.f32.mrf.mxu0
        %v323 = vadd.f32 0.0, %v322
        %324 = vmatmul.f32.gmra.mxu0 %v288
        %v325 = vpop.f32.mrf.mxu0
        %v326 = vadd.f32 0.0, %v325
        %327 = vmatmul.f32.gmra.mxu0 %v289
        %v328 = vpop.f32.mrf.mxu0
        %v329 = vadd.f32 0.0, %v328
        %330 = vmatmul.f32.gmra.mxu0 %v290
        %v331 = vpop.f32.mrf.mxu0
        %v332 = vadd.f32 0.0, %v331
        %333 = vmatmul.f32.gmra.mxu0 %v291
        %v334 = vpop.f32.mrf.mxu0
        %v335 = vadd.f32 0.0, %v334
        %336 = vmatmul.f32.gmra.mxu0 %v292
        %v337 = vpop.f32.mrf.mxu0
        %v338 = vadd.f32 0.0, %v337
        %339 = vmatmul.f32.gmra.mxu0 %v293
        %v340 = vpop.f32.mrf.mxu0
        %v341 = vadd.f32 0.0, %v340
        %342 = vmatmul.f32.gmra.mxu0 %v294
        %v343 = vpop.f32.mrf.mxu0
        %v344 = vadd.f32 0.0, %v343
        %345 = vmatmul.f32.gmra.mxu0 %v295
        %v346 = vpop.f32.mrf.mxu0
        %v347 = vadd.f32 0.0, %v346
        %348 = vmatmul.f32.gmra.mxu0 %v296
        %v349 = vpop.f32.mrf.mxu0
        %v350 = vadd.f32 0.0, %v349
        %351 = vmatmul.f32.gmra.mxu0 %v297
        %v352 = vpop.f32.mrf.mxu0
        %v353 = vadd.f32 0.0, %v352
        %354 = vmatmul.f32.gmra.mxu0 %v298
        %v355 = vpop.f32.mrf.mxu0
        %v356 = vadd.f32 0.0, %v355
        %357 = vmatmul.f32.gmra.mxu0 %v299
        %v358 = vpop.f32.mrf.mxu0
        %v359 = vadd.f32 0.0, %v358
        %360 = vmatmul.f32.gmra.mxu0 %v300
        %v361 = vpop.f32.mrf.mxu0
        %v362 = vadd.f32 0.0, %v361
        %363 = vmatmul.f32.gmra.mxu0 %v301
        %v364 = vpop.f32.mrf.mxu0
        %v365 = vadd.f32 0.0, %v364
        %366 = vdwg.mxu0
        %p367 = scmp.eq.s32.totalorder %s31, 0
        // Predicated region
        $region37: #{tpu_custom_call.1} parent=27 // pred_check
          %p368 = pneg %p367
        $region38: #{tpu_custom_call.1} parent=27 // pred_check_branch
          %370 = sbr.rel (%p368) target = $region40
        $region39: #{tpu_custom_call.1} parent=27 // pred_region
          %371 = vst [vmem:[#allocation2] sm:$0xff] %v320
          %372 = vst [vmem:[#allocation2 + $0x8] sm:$0xff] %v323
          %373 = vst [vmem:[#allocation2 + $0x10] sm:$0xff] %v326
          %374 = vst [vmem:[#allocation2 + $0x18] sm:$0xff] %v329
          %375 = vst [vmem:[#allocation2 + $0x20] sm:$0xff] %v332
          %376 = vst [vmem:[#allocation2 + $0x28] sm:$0xff] %v335
          %377 = vst [vmem:[#allocation2 + $0x30] sm:$0xff] %v338
          %378 = vst [vmem:[#allocation2 + $0x38] sm:$0xff] %v341
          %379 = vst [vmem:[#allocation2 + $0x40] sm:$0xff] %v344
          %380 = vst [vmem:[#allocation2 + $0x48] sm:$0xff] %v347
          %381 = vst [vmem:[#allocation2 + $0x50] sm:$0xff] %v350
          %382 = vst [vmem:[#allocation2 + $0x58] sm:$0xff] %v353
          %383 = vst [vmem:[#allocation2 + $0x60] sm:$0xff] %v356
          %384 = vst [vmem:[#allocation2 + $0x68] sm:$0xff] %v359
          %385 = vst [vmem:[#allocation2 + $0x70] sm:$0xff] %v362
          %386 = vst [vmem:[#allocation2 + $0x78] sm:$0xff] %v365
        $region40: #{tpu_custom_call.1} parent=27 // pred_fallthru
          _
        %p387 = scmp.gt.s32.totalorder %s31, 0
        // Predicated region
        $region41: #{tpu_custom_call.1} parent=27 // pred_check
          %p388 = pneg %p387
        $region42: #{tpu_custom_call.1} parent=27 // pred_check_branch
          %390 = sbr.rel (%p388) target = $region44
        $region43: #{tpu_custom_call.1} parent=27 // pred_region
          %v391 = vld [vmem:[#allocation2] sm:$0xff]
          %v392 = vld [vmem:[#allocation2 + $0x8] sm:$0xff]
          %v393 = vld [vmem:[#allocation2 + $0x10] sm:$0xff]
          %v394 = vld [vmem:[#allocation2 + $0x18] sm:$0xff]
          %v395 = vld [vmem:[#allocation2 + $0x20] sm:$0xff]
          %v396 = vld [vmem:[#allocation2 + $0x28] sm:$0xff]
          %v397 = vld [vmem:[#allocation2 + $0x30] sm:$0xff]
          %v398 = vld [vmem:[#allocation2 + $0x38] sm:$0xff]
          %v399 = vld [vmem:[#allocation2 + $0x40] sm:$0xff]
          %v400 = vld [vmem:[#allocation2 + $0x48] sm:$0xff]
          %v401 = vld [vmem:[#allocation2 + $0x50] sm:$0xff]
          %v402 = vld [vmem:[#allocation2 + $0x58] sm:$0xff]
          %v403 = vld [vmem:[#allocation2 + $0x60] sm:$0xff]
          %v404 = vld [vmem:[#allocation2 + $0x68] sm:$0xff]
          %v405 = vld [vmem:[#allocation2 + $0x70] sm:$0xff]
          %v406 = vld [vmem:[#allocation2 + $0x78] sm:$0xff]
          %v407 = vadd.f32 %v391, %v320
          %v408 = vadd.f32 %v392, %v323
          %v409 = vadd.f32 %v393, %v326
          %v410 = vadd.f32 %v394, %v329
          %v411 = vadd.f32 %v395, %v332
          %v412 = vadd.f32 %v396, %v335
          %v413 = vadd.f32 %v397, %v338
          %v414 = vadd.f32 %v398, %v341
          %v415 = vadd.f32 %v399, %v344
          %v416 = vadd.f32 %v400, %v347
          %v417 = vadd.f32 %v401, %v350
          %v418 = vadd.f32 %v402, %v353
          %v419 = vadd.f32 %v403, %v356
          %v420 = vadd.f32 %v404, %v359
          %v421 = vadd.f32 %v405, %v362
          %v422 = vadd.f32 %v406, %v365
          %423 = vst [vmem:[#allocation2] sm:$0xff] %v407
          %424 = vst [vmem:[#allocation2 + $0x8] sm:$0xff] %v408
          %425 = vst [vmem:[#allocation2 + $0x10] sm:$0xff] %v409
          %426 = vst [vmem:[#allocation2 + $0x18] sm:$0xff] %v410
          %427 = vst [vmem:[#allocation2 + $0x20] sm:$0xff] %v411
          %428 = vst [vmem:[#allocation2 + $0x28] sm:$0xff] %v412
          %429 = vst [vmem:[#allocation2 + $0x30] sm:$0xff] %v413
          %430 = vst [vmem:[#allocation2 + $0x38] sm:$0xff] %v414
          %431 = vst [vmem:[#allocation2 + $0x40] sm:$0xff] %v415
          %432 = vst [vmem:[#allocation2 + $0x48] sm:$0xff] %v416
          %433 = vst [vmem:[#allocation2 + $0x50] sm:$0xff] %v417
          %434 = vst [vmem:[#allocation2 + $0x58] sm:$0xff] %v418
          %435 = vst [vmem:[#allocation2 + $0x60] sm:$0xff] %v419
          %436 = vst [vmem:[#allocation2 + $0x68] sm:$0xff] %v420
          %437 = vst [vmem:[#allocation2 + $0x70] sm:$0xff] %v421
          %438 = vst [vmem:[#allocation2 + $0x78] sm:$0xff] %v422
        $region44: #{tpu_custom_call.1} parent=27 // pred_fallthru
          _
        // Predicated region
        $region45: #{tpu_custom_call.1} parent=27 // pred_check
          %p439 = pneg %p367
        $region46: #{tpu_custom_call.1} parent=27 // pred_check_branch
          %441 = sbr.rel (%p439) target = $region48
        $region47: #{tpu_custom_call.1} parent=27 // pred_region
          %v442 = vld [vmem:[#allocation2] sm:$0xff]
          %v443 = vld [vmem:[#allocation2 + $0x8] sm:$0xff]
          %v444 = vld [vmem:[#allocation2 + $0x10] sm:$0xff]
          %v445 = vld [vmem:[#allocation2 + $0x18] sm:$0xff]
          %v446 = vld [vmem:[#allocation2 + $0x20] sm:$0xff]
          %v447 = vld [vmem:[#allocation2 + $0x28] sm:$0xff]
          %v448 = vld [vmem:[#allocation2 + $0x30] sm:$0xff]
          %v449 = vld [vmem:[#allocation2 + $0x38] sm:$0xff]
          %v450 = vld [vmem:[#allocation2 + $0x40] sm:$0xff]
          %v451 = vld [vmem:[#allocation2 + $0x48] sm:$0xff]
          %v452 = vld [vmem:[#allocation2 + $0x50] sm:$0xff]
          %v453 = vld [vmem:[#allocation2 + $0x58] sm:$0xff]
          %v454 = vld [vmem:[#allocation2 + $0x60] sm:$0xff]
          %v455 = vld [vmem:[#allocation2 + $0x68] sm:$0xff]
          %v456 = vld [vmem:[#allocation2 + $0x70] sm:$0xff]
          %v457 = vld [vmem:[#allocation2 + $0x78] sm:$0xff]
          %458 = vst [vmem:[%s253] sm:$0xff] %v442
          %459 = vst [vmem:[%s253 + $0x8] sm:$0xff] %v443
          %460 = vst [vmem:[%s253 + $0x10] sm:$0xff] %v444
          %461 = vst [vmem:[%s253 + $0x18] sm:$0xff] %v445
          %462 = vst [vmem:[%s253 + $0x20] sm:$0xff] %v446
          %463 = vst [vmem:[%s253 + $0x28] sm:$0xff] %v447
          %464 = vst [vmem:[%s253 + $0x30] sm:$0xff] %v448
          %465 = vst [vmem:[%s253 + $0x38] sm:$0xff] %v449
          %466 = vst [vmem:[%s253 + $0x40] sm:$0xff] %v450
          %467 = vst [vmem:[%s253 + $0x48] sm:$0xff] %v451
          %468 = vst [vmem:[%s253 + $0x50] sm:$0xff] %v452
          %469 = vst [vmem:[%s253 + $0x58] sm:$0xff] %v453
          %470 = vst [vmem:[%s253 + $0x60] sm:$0xff] %v454
          %471 = vst [vmem:[%s253 + $0x68] sm:$0xff] %v455
          %472 = vst [vmem:[%s253 + $0x70] sm:$0xff] %v456
          %473 = vst [vmem:[%s253 + $0x78] sm:$0xff] %v457
          %v474 = vadd.f32 %v442, %v443
          %v475 = vadd.f32 %v474, %v444
          %v476 = vadd.f32 %v475, %v445
          %v477 = vadd.f32 %v476, %v446
          %v478 = vadd.f32 %v477, %v447
          %v479 = vadd.f32 %v478, %v448
          %v480 = vadd.f32 %v479, %v449
          %v481 = vadd.f32 %v480, %v450
          %v482 = vadd.f32 %v481, %v451
          %v483 = vadd.f32 %v482, %v452
          %v484 = vadd.f32 %v483, %v453
          %v485 = vadd.f32 %v484, %v454
          %v486 = vadd.f32 %v485, %v455
          %v487 = vadd.f32 %v486, %v456
          %v488 = vadd.f32 %v487, %v457
          %v489 = vrot.slane %v488, 4
          %v490 = vadd.f32 %v488, %v489
          %v491 = vrot.slane %v490, 2
          %v492 = vadd.f32 %v490, %v491
          %v493 = vrot.slane %v492, 1
          %v494 = vadd.f32 %v492, %v493
          %495 = vst [vmem:[%s259] sm:$0x1] %v494
          %v496 = vmul.f32 %v442, %v442
          %v497 = vmul.f32 %v443, %v443
          %v498 = vmul.f32 %v444, %v444
          %v499 = vmul.f32 %v445, %v445
          %v500 = vmul.f32 %v446, %v446
          %v501 = vmul.f32 %v447, %v447
          %v502 = vmul.f32 %v448, %v448
          %v503 = vmul.f32 %v449, %v449
          %v504 = vmul.f32 %v450, %v450
          %v505 = vmul.f32 %v451, %v451
          %v506 = vmul.f32 %v452, %v452
          %v507 = vmul.f32 %v453, %v453
          %v508 = vmul.f32 %v454, %v454
          %v509 = vmul.f32 %v455, %v455
          %v510 = vmul.f32 %v456, %v456
          %v511 = vmul.f32 %v457, %v457
          %v512 = vadd.f32 %v496, %v497
          %v513 = vadd.f32 %v512, %v498
          %v514 = vadd.f32 %v513, %v499
          %v515 = vadd.f32 %v514, %v500
          %v516 = vadd.f32 %v515, %v501
          %v517 = vadd.f32 %v516, %v502
          %v518 = vadd.f32 %v517, %v503
          %v519 = vadd.f32 %v518, %v504
          %v520 = vadd.f32 %v519, %v505
          %v521 = vadd.f32 %v520, %v506
          %v522 = vadd.f32 %v521, %v507
          %v523 = vadd.f32 %v522, %v508
          %v524 = vadd.f32 %v523, %v509
          %v525 = vadd.f32 %v524, %v510
          %v526 = vadd.f32 %v525, %v511
          %v527 = vrot.slane %v526, 4
          %v528 = vadd.f32 %v526, %v527
          %v529 = vrot.slane %v528, 2
          %v530 = vadd.f32 %v528, %v529
          %v531 = vrot.slane %v530, 1
          %v532 = vadd.f32 %v530, %v531
          %533 = vst [vmem:[%s265] sm:$0x1] %v532
        $region48: #{tpu_custom_call.1} parent=27 // pred_fallthru
          _
        %s534 = sand.u32 %s95, 1
        %s535 = scalar_lea.sflag [#allocation5], %s534
        %s536 = sand.u32 %s95, 1
        %s537 = smul.addr %s536, 128
        %s538 = scalar_lea.vmem [#allocation8], %s537
        %s539 = sand.u32 %s26, 1
        %s540 = scalar_lea.sflag [#allocation10], %s539
        %s541 = sand.u32 %s121, 1
        %s542 = scalar_lea.vmem [#allocation9], %s541
        %s543 = sand.u32 %s26, 1
        %s544 = scalar_lea.sflag [#allocation10], %s543
        %s545 = sand.u32 %s147, 1
        %s546 = scalar_lea.vmem [#allocation11], %s545
        // Predicated region
        $region49: #{tpu_custom_call.1} parent=27 // pred_check
          %p547 = pneg %p105
        $region50: #{tpu_custom_call.1} parent=27 // pred_check_branch
          %549 = sbr.rel (%p547) target = $region52
        $region51: #{tpu_custom_call.1} parent=27 // pred_region
          %s550 = smul.u32 16, %s30
          %552 = vsyncadd %s535, 0
          %s553 = smul.addr %s550, 8
          %s554 = scalar_lea.hbm %s2, %s553
          %s555 = sshll.u32 %s538, 4
          %s556 = int_to_ptr.vmem [resolvable:$true] %s555
          %s557 = sshll.u32 %s554, 4
          %s558 = int_to_ptr.hbm [resolvable:$true] %s557
          %563 = dma.vmem_to_hbm [thread:$0]  %s556, 2048, %s558, %s535, 128, 128, 8
        $region52: #{tpu_custom_call.1} parent=27 // pred_fallthru
          _
        // Predicated region
        $region53: #{tpu_custom_call.1} parent=27 // pred_check
          %p564 = pneg %p131
        $region54: #{tpu_custom_call.1} parent=27 // pred_check_branch
          %566 = sbr.rel (%p564) target = $region56
        $region55: #{tpu_custom_call.1} parent=27 // pred_region
          %568 = vsyncadd %s540, 0
          %s569 = scalar_lea.hbm %s3, %s30
          %s571 = sshll.u32 %s542, 4
          %s572 = int_to_ptr.vmem [resolvable:$true] %s571
          %s573 = sshll.u32 %s569, 4
          %s574 = int_to_ptr.hbm [resolvable:$true] %s573
          %576 = dma.vmem_to_hbm [thread:$0]  %s572, 16, %s574, %s540
        $region56: #{tpu_custom_call.1} parent=27 // pred_fallthru
          _
        // Predicated region
        $region57: #{tpu_custom_call.1} parent=27 // pred_check
          %p577 = pneg %p157
        $region58: #{tpu_custom_call.1} parent=27 // pred_check_branch
          %579 = sbr.rel (%p577) target = $region60
        $region59: #{tpu_custom_call.1} parent=27 // pred_region
          %581 = vsyncadd %s544, 0
          %s582 = scalar_lea.hbm %s4, %s30
          %s584 = sshll.u32 %s546, 4
          %s585 = int_to_ptr.vmem [resolvable:$true] %s584
          %s586 = sshll.u32 %s582, 4
          %s587 = int_to_ptr.hbm [resolvable:$true] %s586
          %589 = dma.vmem_to_hbm [thread:$0]  %s585, 16, %s587, %s544
        $region60: #{tpu_custom_call.1} parent=27 // pred_fallthru
          _
      $region28: #{tpu_custom_call.1} parent=5 // pred_fallthru
        _
      %p590 = scmp.le.s32.totalorder 2, %s21
      // Predicated region
      $region61: #{tpu_custom_call.1} parent=5 // pred_check
        %p591 = pneg %p590
      $region62: #{tpu_custom_call.1} parent=5 // pred_check_branch
        %593 = sbr.rel (%p591) target = $region64
      $region63: #{tpu_custom_call.1} parent=5 // pred_region
        %s594 = ssub.s32 %s21, 2
        // Predicated region
        $region65: #{tpu_custom_call.1} parent=63 // pred_check
          %p595 = pneg %p111
        $region66: #{tpu_custom_call.1} parent=63 // pred_check_branch
          %597 = sbr.rel (%p595) target = $region68
        $region67: #{tpu_custom_call.1} parent=63 // pred_region
          %s598 = sand.u32 %s96, 1
          %s599 = scalar_lea.sflag [#allocation5], %s598
          %s600 = sand.u32 %s96, 1
          %s601 = smul.addr %s600, 128
          %s602 = scalar_lea.vmem [#allocation8], %s601
          %604 = dma.done %s599, 2048
        $region68: #{tpu_custom_call.1} parent=63 // pred_fallthru
          _
        // Predicated region
        $region69: #{tpu_custom_call.1} parent=63 // pred_check
          %p605 = pneg %p137
        $region70: #{tpu_custom_call.1} parent=63 // pred_check_branch
          %607 = sbr.rel (%p605) target = $region72
        $region71: #{tpu_custom_call.1} parent=63 // pred_region
          %s608 = sand.u32 %s27, 1
          %s609 = scalar_lea.sflag [#allocation10], %s608
          %s610 = sand.u32 %s122, 1
          %s611 = scalar_lea.vmem [#allocation9], %s610
          %613 = dma.done %s609, 16
        $region72: #{tpu_custom_call.1} parent=63 // pred_fallthru
          _
        // Predicated region
        $region73: #{tpu_custom_call.1} parent=63 // pred_check
          %p614 = pneg %p163
        $region74: #{tpu_custom_call.1} parent=63 // pred_check_branch
          %616 = sbr.rel (%p614) target = $region76
        $region75: #{tpu_custom_call.1} parent=63 // pred_region
          %s617 = sand.u32 %s27, 1
          %s618 = scalar_lea.sflag [#allocation10], %s617
          %s619 = sand.u32 %s148, 1
          %s620 = scalar_lea.vmem [#allocation11], %s619
          %622 = dma.done %s618, 16
        $region76: #{tpu_custom_call.1} parent=63 // pred_fallthru
          _
      $region64: #{tpu_custom_call.1} parent=5 // pred_fallthru
        _
    $region6: #{tpu_custom_call.1} parent=1 // loop_footer
      %s25 = sadd.s32 1, %s21
    $region7: #{tpu_custom_call.1} parent=1 // loop_footer_branch
      %20 = sbr.rel target = $region3
    $region8: #{tpu_custom_call.1} parent=1 // loop_exit
      _
    %623 = vsyncpa [#allocation4], 1
    %s624 = scalar_lea.sflag [#allocation4], 1
    %625 = vsyncpa %s624, 1
    %626 = vsyncpa [#allocation7], 1
    %627 = vsyncpa [#allocation5], 1
    %s628 = scalar_lea.sflag [#allocation5], 1
    %629 = vsyncpa %s628, 1
    %630 = vsyncpa [#allocation10], 1
    %s631 = scalar_lea.sflag [#allocation10], 1
    %632 = vsyncpa %s631, 1

</llo_original>
